<compile_context>
chip_gen: v7x
topology: tpu7x:2x2x1
jax: 0.10.0
libtpu: 0.0.40
codegen_flags: <defaults>
</compile_context>

<pallas_src>
import jax
import jax.numpy as jnp
from jax.experimental import pallas as pl
from jax.experimental.pallas import tpu as pltpu


# ----------------------------------------------------------------------------
# Helpers
# ----------------------------------------------------------------------------
def _pick_tile_rows(H, W):
    """Smallest TH dividing H with TH*W a multiple of 128 (lane-dense blocks).

    Falls back to TH == H (block == full extent, always a legal BlockSpec).
    """
    for th in range(1, H + 1):
        if H % th == 0 and (th * W) % 128 == 0:
            return th
    # TODO(synk): for W values that can't reach a 128-multiple tile, add W
    # tiling instead of falling back to a whole-image block per batch element.
    return H


def _upsample_matrix(TH, W, dtype):
    """U[(i*W + j), ((2*i+dy)*2W + 2*j+dx)] = 1  for dy, dx in {0, 1}.

    Right-multiplying the (Ch, TH*W) conv result by U performs the 2x nearest
    upsample AND produces the flattened row-major (2*TH, 2*W) layout of the
    output block in one MXU pass -> no in-kernel lane shuffles.
    """
    S = TH * W
    src = jnp.arange(S)
    si, sj = src // W, src % W
    dst = jnp.arange(4 * S)
    di, dj = dst // (2 * W), dst % (2 * W)
    U = (di[None, :] // 2 == si[:, None]) & (dj[None, :] // 2 == sj[:, None])
    return U.astype(dtype)


# ----------------------------------------------------------------------------
# Fused Pallas kernel: 1x1 conv (pre-upsample) + 2x nearest upsample + concat
# ----------------------------------------------------------------------------
def _upsample_cat_kernel(x_ref, w_ref, b_ref, u_ref, f_ref, o_ref):
    """One (batch, row-tile) block, NCHW with flattened spatial dims.

    x_ref: (1, C,  S)         low-res rows of x,  S = TH*W
    w_ref: (Ch, C)            1x1 conv weight
    b_ref: (Ch, 1)            conv bias
    u_ref: (S, 4*S)           0/1 nearest-upsample matrix
    f_ref: (1, Cf, 4*S)       matching hi-res rows of the skip feature map
    o_ref: (1, Ch+Cf, 4*S)    output rows: channels [0:Ch) conv, [Ch:) features
    """
    Ch = w_ref.shape[0]
    Cf = f_ref.shape[1]

    # 1x1 conv on the pre-upsample grid (commutes with nearest upsampling):
    # (Ch, C) @ (C, S) -> (Ch, S) on the MXU.
    y = jnp.dot(w_ref[...], x_ref[0], preferred_element_type=jnp.float32)
    y = y + b_ref[...]

    # 2x nearest upsample as a second (tiny) MXU matmul that lands directly in
    # the flattened hi-res row-major layout: (Ch, S) @ (S, 4S) -> (Ch, 4S).
    up = jnp.dot(y, u_ref[...], preferred_element_type=jnp.float32)

    # Channel concat == two sublane-range stores into the same NCHW block.
    o_ref[0, pl.ds(0, Ch), :] = up.astype(o_ref.dtype)
    o_ref[0, pl.ds(Ch, Cf), :] = f_ref[0]


def upsample_forward(params, x_nchw, feat_nchw):
    """UpSample.forward.  x: (B, C, H, W), feature_map: (B, Cf, 2H, 2W), NCHW."""
    w, b = params["w"], params["b"]            # w: (Ch, C, 1, 1), b: (Ch,)
    B, C, H, W = x_nchw.shape
    Ch = w.shape[0]
    Bf, Cf, Hf, Wf = feat_nchw.shape
    assert w.shape[1] == C and (Bf, Hf, Wf) == (B, 2 * H, 2 * W)
    Ct = Ch + Cf

    TH = _pick_tile_rows(H, W)
    S = TH * W
    n_h = H // TH

    # Free (contiguous) reshapes only -- no transposes at the boundary.
    x_flat = x_nchw.reshape(B, C, H * W)
    f_flat = feat_nchw.reshape(B, Cf, 4 * H * W)
    wm = w.reshape(Ch, C)
    b2 = b.reshape(Ch, 1)
    U = _upsample_matrix(TH, W, x_nchw.dtype)

    itemsize = jnp.dtype(x_nchw.dtype).itemsize
    flops = 2 * B * n_h * (Ch * C * S + Ch * S * 4 * S)
    bytes_accessed = itemsize * (
        x_flat.size + f_flat.size + B * Ct * 4 * H * W
        + wm.size + b2.size + U.size)

    out_flat = pl.pallas_call(
        _upsample_cat_kernel,
        out_shape=jax.ShapeDtypeStruct((B, Ct, 4 * H * W), x_nchw.dtype),
        grid=(B, n_h),
        in_specs=[
            pl.BlockSpec((1, C, S), lambda bi, hi: (bi, 0, hi)),
            pl.BlockSpec((Ch, C), lambda bi, hi: (0, 0)),        # grid-invariant
            pl.BlockSpec((Ch, 1), lambda bi, hi: (0, 0)),        # grid-invariant
            pl.BlockSpec((S, 4 * S), lambda bi, hi: (0, 0)),     # grid-invariant
            pl.BlockSpec((1, Cf, 4 * S), lambda bi, hi: (bi, 0, hi)),
        ],
        out_specs=pl.BlockSpec((1, Ct, 4 * S), lambda bi, hi: (bi, 0, hi)),
        compiler_params=pltpu.CompilerParams(
            dimension_semantics=("parallel", "parallel")),
        cost_estimate=pl.CostEstimate(
            flops=int(flops), transcendentals=0,
            bytes_accessed=int(bytes_accessed)),
    )(x_flat, wm, b2, U, f_flat)

    # Free contiguous reshape back to NCHW.
    return out_flat.reshape(B, Ct, 2 * H, 2 * W)


# ----------------------------------------------------------------------------
# Pure-JAX reference (correctness check only)
# ----------------------------------------------------------------------------
def _reference(params, x_nchw, feat_nchw):
    w, b = params["w"], params["b"]
    up = jnp.repeat(jnp.repeat(x_nchw, 2, axis=2), 2, axis=3)
    conv = jax.lax.conv_general_dilated(
        up, w, window_strides=(1, 1), padding="VALID",
        dimension_numbers=("NCHW", "OIHW", "NCHW"))
    conv = conv + b.reshape(1, -1, 1, 1)
    return jnp.concatenate([conv, feat_nchw], axis=1)


if __name__ == "__main__":
    key = jax.random.PRNGKey(0)
    k1, k2, k3, k4 = jax.random.split(key, 4)

    # UpSample(channel=64): x (B, 64, 16, 16), feature_map (B, 32, 32, 32).
    B, C, H, W = 2, 64, 16, 16
    Ch = C // 2
    x = jax.random.normal(k1, (B, C, H, W), jnp.float32)
    feat = jax.random.normal(k2, (B, Ch, 2 * H, 2 * W), jnp.float32)
    params = {
        "w": jax.random.normal(k3, (Ch, C, 1, 1), jnp.float32)
             * (1.0 / jnp.sqrt(C)),
        "b": jax.random.normal(k4, (Ch,), jnp.float32) * 0.01,
    }

    fwd = jax.jit(upsample_forward)
    y = fwd(params, x, feat)
    jax.block_until_ready(y)

    assert y.shape == (B, C, 2 * H, 2 * W) and y.dtype == jnp.float32
    ref = _reference(params, x, feat)
    assert jnp.allclose(y, ref, atol=1e-4, rtol=1e-4), "mismatch vs reference"
    print("KERNEL_OK")
</pallas_src>

<mosaic_0001>
module attributes {stable_mosaic.version = 11 : i64} {
  func.func @_upsample_cat_kernel(%arg0: i32, %arg1: i32, %arg2: memref<1x64x128xf32, #tpu.memory_space<vmem>>, %arg3: memref<32x64xf32, #tpu.memory_space<vmem>>, %arg4: memref<32x1xf32, #tpu.memory_space<vmem>>, %arg5: memref<128x512xf32, #tpu.memory_space<vmem>>, %arg6: memref<1x32x512xf32, #tpu.memory_space<vmem>>, %arg7: memref<1x64x512xf32, #tpu.memory_space<vmem>>) attributes {dimension_semantics = [#tpu.dimension_semantics<parallel>, #tpu.dimension_semantics<parallel>], iteration_bounds = array<i64: 2, 2>, scalar_prefetch = 0 : i64, scratch_operands = 0 : i64, tpu.core_type = #tpu.core_type<tc>, window_params = [{transform_indices = @transform_0, window_bounds = array<i64: 1, 64, 128>}, {pipeline_mode = #tpu.pipeline_mode<synchronous>, transform_indices = @transform_1, window_bounds = array<i64: 32, 64>}, {pipeline_mode = #tpu.pipeline_mode<synchronous>, transform_indices = @transform_2, window_bounds = array<i64: 32, 1>}, {pipeline_mode = #tpu.pipeline_mode<synchronous>, transform_indices = @transform_3, window_bounds = array<i64: 128, 512>}, {transform_indices = @transform_4, window_bounds = array<i64: 1, 32, 512>}, {transform_indices = @transform_5, window_bounds = array<i64: 1, 64, 512>}]} {
    %c0 = arith.constant 0 : index
    %c0_0 = arith.constant 0 : index
    %0 = vector.load %arg3[%c0, %c0_0] : memref<32x64xf32, #tpu.memory_space<vmem>>, vector<32x64xf32>
    %c0_1 = arith.constant 0 : index
    %c0_2 = arith.constant 0 : index
    %c0_3 = arith.constant 0 : index
    %1 = vector.load %arg2[%c0_1, %c0_2, %c0_3] : memref<1x64x128xf32, #tpu.memory_space<vmem>>, vector<1x64x128xf32>
    %2 = vector.shape_cast %1 : vector<1x64x128xf32> to vector<64x128xf32>
    %cst = arith.constant dense<0.000000e+00> : vector<32x128xf32>
    %3 = tpu.matmul %0, %2, %cst {dimension_numbers = #tpu.dot_dimension_numbers<[1], [0], [0], [1], [0, 0, 1, 1], [], []>} : vector<32x64xf32>, vector<64x128xf32>, vector<32x128xf32> -> vector<32x128xf32>
    %c0_4 = arith.constant 0 : index
    %c0_5 = arith.constant 0 : index
    %4 = vector.load %arg4[%c0_4, %c0_5] : memref<32x1xf32, #tpu.memory_space<vmem>>, vector<32x1xf32>
    %5 = vector.broadcast %4 : vector<32x1xf32> to vector<32x128xf32>
    %6 = arith.addf %3, %5 : vector<32x128xf32>
    %c0_6 = arith.constant 0 : index
    %c0_7 = arith.constant 0 : index
    %7 = vector.load %arg5[%c0_6, %c0_7] : memref<128x512xf32, #tpu.memory_space<vmem>>, vector<128x512xf32>
    %cst_8 = arith.constant dense<0.000000e+00> : vector<32x512xf32>
    %8 = tpu.matmul %6, %7, %cst_8 {dimension_numbers = #tpu.dot_dimension_numbers<[1], [0], [0], [1], [0, 0, 1, 1], [], []>} : vector<32x128xf32>, vector<128x512xf32>, vector<32x512xf32> -> vector<32x512xf32>
    %c0_9 = arith.constant 0 : index
    %c0_10 = arith.constant 0 : index
    %c0_11 = arith.constant 0 : index
    %9 = vector.load %arg7[%c0_9, %c0_10, %c0_11] : memref<1x64x512xf32, #tpu.memory_space<vmem>>, vector<1x32x512xf32>
    %10 = vector.shape_cast %9 : vector<1x32x512xf32> to vector<32x512xf32>
    %11 = vector.shape_cast %8 : vector<32x512xf32> to vector<1x32x512xf32>
    tpu.vector_store %arg7[%c0_9, %c0_10, %c0_11], %11 {strides = array<i32>} : memref<1x64x512xf32, #tpu.memory_space<vmem>>, vector<1x32x512xf32>,
    %c0_12 = arith.constant 0 : index
    %c0_13 = arith.constant 0 : index
    %c0_14 = arith.constant 0 : index
    %12 = vector.load %arg6[%c0_12, %c0_13, %c0_14] : memref<1x32x512xf32, #tpu.memory_space<vmem>>, vector<1x32x512xf32>
    %13 = vector.shape_cast %12 : vector<1x32x512xf32> to vector<32x512xf32>
    %c0_15 = arith.constant 0 : index
    %c32 = arith.constant 32 : index
    %c0_16 = arith.constant 0 : index
    %14 = vector.load %arg7[%c0_15, %c32, %c0_16] : memref<1x64x512xf32, #tpu.memory_space<vmem>>, vector<1x32x512xf32>
    %15 = vector.shape_cast %14 : vector<1x32x512xf32> to vector<32x512xf32>
    %16 = vector.shape_cast %13 : vector<32x512xf32> to vector<1x32x512xf32>
    tpu.vector_store %arg7[%c0_15, %c32, %c0_16], %16 {strides = array<i32>} : memref<1x64x512xf32, #tpu.memory_space<vmem>>, vector<1x32x512xf32>,
    return
  }
  func.func @transform_0(%arg0: i32, %arg1: i32) -> (i32, i32, i32) {
    %c0_i32 = arith.constant 0 : i32
    %c0_i32_0 = arith.constant 0 : i32
    return %arg0, %c0_i32, %arg1 : i32, i32, i32
  }
  func.func @transform_1(%arg0: i32, %arg1: i32) -> (i32, i32) {
    %c0_i32 = arith.constant 0 : i32
    %c0_i32_0 = arith.constant 0 : i32
    %c0_i32_1 = arith.constant 0 : i32
    return %c0_i32, %c0_i32_0 : i32, i32
  }
  func.func @transform_2(%arg0: i32, %arg1: i32) -> (i32, i32) {
    %c0_i32 = arith.constant 0 : i32
    %c0_i32_0 = arith.constant 0 : i32
    %c0_i32_1 = arith.constant 0 : i32
    return %c0_i32, %c0_i32_0 : i32, i32
  }
  func.func @transform_3(%arg0: i32, %arg1: i32) -> (i32, i32) {
    %c0_i32 = arith.constant 0 : i32
    %c0_i32_0 = arith.constant 0 : i32
    %c0_i32_1 = arith.constant 0 : i32
    return %c0_i32, %c0_i32_0 : i32, i32
  }
  func.func @transform_4(%arg0: i32, %arg1: i32) -> (i32, i32, i32) {
    %c0_i32 = arith.constant 0 : i32
    %c0_i32_0 = arith.constant 0 : i32
    return %arg0, %c0_i32, %arg1 : i32, i32, i32
  }
  func.func @transform_5(%arg0: i32, %arg1: i32) -> (i32, i32, i32) {
    %c0_i32 = arith.constant 0 : i32
    %c0_i32_0 = arith.constant 0 : i32
    return %arg0, %c0_i32, %arg1 : i32, i32, i32
  }
}

</mosaic_0001>

<llo_original>
// kernel: upsample_forward.1
$region0: #{upsample_forward.1}
  #allocation0 [shape = 'u32[]', space=smem, size = 0x4, offset = 0x4, fixed_abs, tag = 'smem constant byte address 0x4 - core index']
  #allocation1 [shape = 'u32[144,128]{1,0:T(1,128)}', space=vmem, size = 0x12000, scoped, tag = 'internal scratch']
  %s0 = inlined_call_operand.vmem [shape: f32[2,64,256], index: 0, kind: input, shape index: {}]
  %s1 = inlined_call_operand.vmem [shape: f32[32,64], index: 1, kind: input, shape index: {}]
  %s2 = inlined_call_operand.vmem [shape: f32[32,1], index: 2, kind: input, shape index: {}]
  %s3 = inlined_call_operand.vmem [shape: f32[128,512], index: 3, kind: input, shape index: {}]
  %s4 = inlined_call_operand.vmem [shape: f32[2,32,1024], index: 4, kind: input, shape index: {}]
  %s5 = inlined_call_operand.vmem [shape: f32[2,64,1024], index: 5, kind: output, shape index: {}]
  %s6 = sld [smem:[#allocation0]]
  $region133: #{upsample_forward.1} parent=0
    _
  %s8 = ssub.s32 1, %s6
  %s9 = scalar_select 0, %s8, %s6
  $region1: #{upsample_forward.1} parent=0
    #allocation2 [shape = 'u8[65536]{0}', space=vmem, size = 0x10000, scoped, tag = 'input window, operand 0']
    #allocation3 [shape = 'u8[131072]{0}', space=vmem, size = 0x20000, scoped, tag = 'input window, operand 4']
    #allocation4 [shape = 'u8[262144]{0}', space=vmem, size = 0x40000, scoped, tag = 'output window, operand 0']
    loop: start=0, step=1, limit=6
    $region2: #{upsample_forward.1} parent=1 // loop_pre_header
      _
    $region3: #{upsample_forward.1} parent=1 // loop_header
      %s11 = sphi 0, %s15
      %p12 = scmp.ge.s32.totalorder %s11, 6
      %s18 = sphi 0, %s30
      %s19 = sphi 0, %s26
      %s20 = sphi 0, %s18
      %s21 = sphi 0, %s19
      %s22 = sphi 0, %s20
      %s23 = sphi 0, %s21
      %s35 = sphi 0, %s37
      %s38 = sphi 0, %s35
      %s39 = sphi 0, %s38
      %s55 = sphi 0, %s39
      %s59 = sphi 0, %s59
      %s61 = sphi 0, %s59
      %s62 = sphi 0, %s61
      %s76 = sphi 0, %s62
      %s80 = sphi 0, %s80
      %s82 = sphi 0, %s80
      %s83 = sphi 0, %s82
      %s97 = sphi 0, %s83
      %s101 = sphi 0, %s101
      %s103 = sphi 0, %s101
      %s104 = sphi 0, %s103
      %s118 = sphi 0, %s104
      %s126 = sphi 0, %s128
      %s129 = sphi 0, %s126
      %s130 = sphi 0, %s129
      %s146 = sphi 0, %s130
      %s154 = sphi 0, %s156
      %s157 = sphi 0, %s154
      %s158 = sphi 0, %s157
      %s174 = sphi 0, %s158
    $region4: #{upsample_forward.1} parent=1 // loop_header_branch
      %14 = sbr.rel (%p12) target = $region8
    $region5: #{upsample_forward.1} parent=1 // loop_body
      %s16 = ssub.s32 %s11, 1
      %s17 = ssub.s32 %s11, 2
      %s24 = sadd.s32 1, %s19
      %p25 = scmp.ge.s32.totalorder %s24, 2
      %s26 = scalar_select %p25, 0, %s24
      %s27 = sadd.s32 1, %s18
      %s28 = scalar_select %p25, %s27, %s18
      %p29 = scmp.ge.s32.totalorder %s28, 2
      %s30 = scalar_select %p29, 0, %s28
      %s31 = ssub.s32 %s18, %s30
      %s32 = ssub.s32 %s19, %s26
      %s33 = sor.u32 %s31, %s32
      %p34 = scmp.eq.s32.totalorder %s33, 0
      %s36 = sadd.s32 %s35, 1
      %s37 = scalar_select %p34, %s35, %s36
      %p40 = pneg %p34
      %p41 = scmp.eq.s32.totalorder %s11, 3
      %p42 = por %p40, %p41
      %p43 = scmp.ne.s32.totalorder %s35, %s38
      %p44 = scmp.eq.s32.totalorder %s11, 0
      %p45 = por %p43, %p44
      %p46 = scmp.ne.s32.totalorder %s35, %s38
      %p47 = scmp.eq.s32.totalorder %s16, 3
      %p48 = por %p46, %p47
      %p49 = scmp.ne.s32.totalorder %s38, %s39
      %p50 = scmp.eq.s32.totalorder %s16, 0
      %p51 = por %p49, %p50
      %p52 = scmp.ne.s32.totalorder %s38, %s39
      %p53 = scmp.eq.s32.totalorder %s17, 3
      %p54 = por %p52, %p53
      %p56 = scmp.ne.s32.totalorder %s39, %s55
      %p57 = scmp.eq.s32.totalorder %s17, 0
      %p58 = por %p56, %p57
      %s60 = sadd.s32 %s59, 1
      %p63 = scmp.eq.s32.totalorder %s11, 3
      %p64 = scmp.ne.s32.totalorder %s59, %s61
      %p65 = scmp.eq.s32.totalorder %s11, 0
      %p66 = por %p64, %p65
      %p67 = scmp.ne.s32.totalorder %s59, %s61
      %p68 = scmp.eq.s32.totalorder %s16, 3
      %p69 = por %p67, %p68
      %p70 = scmp.ne.s32.totalorder %s61, %s62
      %p71 = scmp.eq.s32.totalorder %s16, 0
      %p72 = por %p70, %p71
      %p73 = scmp.ne.s32.totalorder %s61, %s62
      %p74 = scmp.eq.s32.totalorder %s17, 3
      %p75 = por %p73, %p74
      %p77 = scmp.ne.s32.totalorder %s62, %s76
      %p78 = scmp.eq.s32.totalorder %s17, 0
      %p79 = por %p77, %p78
      %s81 = sadd.s32 %s80, 1
      %p84 = scmp.eq.s32.totalorder %s11, 3
      %p85 = scmp.ne.s32.totalorder %s80, %s82
      %p86 = scmp.eq.s32.totalorder %s11, 0
      %p87 = por %p85, %p86
      %p88 = scmp.ne.s32.totalorder %s80, %s82
      %p89 = scmp.eq.s32.totalorder %s16, 3
      %p90 = por %p88, %p89
      %p91 = scmp.ne.s32.totalorder %s82, %s83
      %p92 = scmp.eq.s32.totalorder %s16, 0
      %p93 = por %p91, %p92
      %p94 = scmp.ne.s32.totalorder %s82, %s83
      %p95 = scmp.eq.s32.totalorder %s17, 3
      %p96 = por %p94, %p95
      %p98 = scmp.ne.s32.totalorder %s83, %s97
      %p99 = scmp.eq.s32.totalorder %s17, 0
      %p100 = por %p98, %p99
      %s102 = sadd.s32 %s101, 1
      %p105 = scmp.eq.s32.totalorder %s11, 3
      %p106 = scmp.ne.s32.totalorder %s101, %s103
      %p107 = scmp.eq.s32.totalorder %s11, 0
      %p108 = por %p106, %p107
      %p109 = scmp.ne.s32.totalorder %s101, %s103
      %p110 = scmp.eq.s32.totalorder %s16, 3
      %p111 = por %p109, %p110
      %p112 = scmp.ne.s32.totalorder %s103, %s104
      %p113 = scmp.eq.s32.totalorder %s16, 0
      %p114 = por %p112, %p113
      %p115 = scmp.ne.s32.totalorder %s103, %s104
      %p116 = scmp.eq.s32.totalorder %s17, 3
      %p117 = por %p115, %p116
      %p119 = scmp.ne.s32.totalorder %s104, %s118
      %p120 = scmp.eq.s32.totalorder %s17, 0
      %p121 = por %p119, %p120
      %s122 = ssub.s32 %s18, %s30
      %s123 = ssub.s32 %s19, %s26
      %s124 = sor.u32 %s122, %s123
      %p125 = scmp.eq.s32.totalorder %s124, 0
      %s127 = sadd.s32 %s126, 1
      %s128 = scalar_select %p125, %s126, %s127
      %p131 = pneg %p125
      %p132 = scmp.eq.s32.totalorder %s11, 3
      %p133 = por %p131, %p132
      %p134 = scmp.ne.s32.totalorder %s126, %s129
      %p135 = scmp.eq.s32.totalorder %s11, 0
      %p136 = por %p134, %p135
      %p137 = scmp.ne.s32.totalorder %s126, %s129
      %p138 = scmp.eq.s32.totalorder %s16, 3
      %p139 = por %p137, %p138
      %p140 = scmp.ne.s32.totalorder %s129, %s130
      %p141 = scmp.eq.s32.totalorder %s16, 0
      %p142 = por %p140, %p141
      %p143 = scmp.ne.s32.totalorder %s129, %s130
      %p144 = scmp.eq.s32.totalorder %s17, 3
      %p145 = por %p143, %p144
      %p147 = scmp.ne.s32.totalorder %s130, %s146
      %p148 = scmp.eq.s32.totalorder %s17, 0
      %p149 = por %p147, %p148
      %s150 = ssub.s32 %s18, %s30
      %s151 = ssub.s32 %s19, %s26
      %s152 = sor.u32 %s150, %s151
      %p153 = scmp.eq.s32.totalorder %s152, 0
      %s155 = sadd.s32 %s154, 1
      %s156 = scalar_select %p153, %s154, %s155
      %p159 = pneg %p153
      %p160 = scmp.eq.s32.totalorder %s11, 3
      %p161 = por %p159, %p160
      %p162 = scmp.ne.s32.totalorder %s154, %s157
      %p163 = scmp.eq.s32.totalorder %s11, 0
      %p164 = por %p162, %p163
      %p165 = scmp.ne.s32.totalorder %s154, %s157
      %p166 = scmp.eq.s32.totalorder %s16, 3
      %p167 = por %p165, %p166
      %p168 = scmp.ne.s32.totalorder %s157, %s158
      %p169 = scmp.eq.s32.totalorder %s16, 0
      %p170 = por %p168, %p169
      %p171 = scmp.ne.s32.totalorder %s157, %s158
      %p172 = scmp.eq.s32.totalorder %s17, 3
      %p173 = por %p171, %p172
      %p175 = scmp.ne.s32.totalorder %s158, %s174
      %p176 = scmp.eq.s32.totalorder %s17, 0
      %p177 = por %p175, %p176
      %p178 = scmp.le.s32.totalorder 1, %s11
      %p179 = scmp.lt.s32.totalorder %s11, 5
      %p180 = pnand %p178, %p179
      %p181 = pneg %p180
      // Predicated region
      $region9: #{upsample_forward.1} parent=5 // pred_check
        _
      $region10: #{upsample_forward.1} parent=5 // pred_check_branch
        %183 = sbr.rel (%p180) target = $region12
      $region11: #{upsample_forward.1} parent=5 // pred_region
        %s184 = ssub.s32 %s11, 1
        // Predicated region
        $region13: #{upsample_forward.1} parent=11 // pred_check
          %p185 = pneg %p72
        $region14: #{upsample_forward.1} parent=11 // pred_check_branch
          %187 = sbr.rel (%p185) target = $region16
        $region15: #{upsample_forward.1} parent=11 // pred_region
          _
        $region16: #{upsample_forward.1} parent=11 // pred_fallthru
          _
        // Predicated region
        $region17: #{upsample_forward.1} parent=11 // pred_check
          %p188 = pneg %p93
        $region18: #{upsample_forward.1} parent=11 // pred_check_branch
          %190 = sbr.rel (%p188) target = $region20
        $region19: #{upsample_forward.1} parent=11 // pred_region
          _
        $region20: #{upsample_forward.1} parent=11 // pred_fallthru
          _
        // Predicated region
        $region21: #{upsample_forward.1} parent=11 // pred_check
          %p191 = pneg %p114
        $region22: #{upsample_forward.1} parent=11 // pred_check_branch
          %193 = sbr.rel (%p191) target = $region24
        $region23: #{upsample_forward.1} parent=11 // pred_region
          _
        $region24: #{upsample_forward.1} parent=11 // pred_fallthru
          _
      $region12: #{upsample_forward.1} parent=5 // pred_fallthru
        _
      %p194 = scmp.lt.s32.totalorder %s11, 4
      // Predicated region
      $region25: #{upsample_forward.1} parent=5 // pred_check
        %p195 = pneg %p194
      $region26: #{upsample_forward.1} parent=5 // pred_check_branch
        %197 = sbr.rel (%p195) target = $region28
      $region27: #{upsample_forward.1} parent=5 // pred_region
        // Predicated region
        $region29: #{upsample_forward.1} parent=27 // pred_check
          %p198 = pneg %p45
        $region30: #{upsample_forward.1} parent=27 // pred_check_branch
          %200 = sbr.rel (%p198) target = $region32
        $region31: #{upsample_forward.1} parent=27 // pred_region
          %s201 = sand.u32 %s35, 1
          %s202 = sand.u32 %s35, 1
          %s203 = smul.addr %s202, 64
          %s204 = scalar_lea.vmem [#allocation2], %s203
          %s205 = smul.addr %s18, 16
          %s206 = sadd.s32 %s19, %s205
          %s207 = smul.addr %s206, 8
          %s208 = scalar_lea.vmem %s0, %s207
          // Predicated region
          $region33: #{upsample_forward.1} parent=31 // pred_check
            _
          $region34: #{upsample_forward.1} parent=31 // pred_check_branch
            %210 = sbr.rel (0) target = $region36
          $region35: #{upsample_forward.1} parent=31 // pred_region
            // Predicated region
            $region37: #{upsample_forward.1} parent=35 // pred_check
              _
            $region38: #{upsample_forward.1} parent=35 // pred_check_branch
              %212 = sbr.rel (0) target = $region40
            $region39: #{upsample_forward.1} parent=35 // pred_region
              // Predicated region
              $region52: #{upsample_forward.1} parent=39 // pred_check
                _
              $region53: #{upsample_forward.1} parent=39 // pred_check_branch
                %241 = sbr.rel (0) target = $region55
              $region54: #{upsample_forward.1} parent=39 // pred_region
                loop: start=0, step=1, limit=1
                $region56: #{upsample_forward.1} parent=54 // loop_pre_header
                  _
                $region57: #{upsample_forward.1} parent=54 // loop_header
                  %s243 = sphi 0, %s247
                  %p244 = scmp.ge.s32.totalorder %s243, 1
                  %s248 = sphi %s208, %s208
                  %s249 = sphi %s204, %s204
                $region58: #{upsample_forward.1} parent=54 // loop_header_branch
                  %246 = sbr.rel (%p244) target = $region62
                $region59: #{upsample_forward.1} parent=54 // loop_body
                  %v250 = vld [vmem:[%s248] sm:$0xff]
                  %251 = vst [vmem:[%s249] sm:$0xff] %v250
                  %v252 = vld [vmem:[%s248 + $0x10] sm:$0xff]
                  %253 = vst [vmem:[%s249 + $0x8] sm:$0xff] %v252
                  %v254 = vld [vmem:[%s248 + $0x20] sm:$0xff]
                  %255 = vst [vmem:[%s249 + $0x10] sm:$0xff] %v254
                  %v256 = vld [vmem:[%s248 + $0x30] sm:$0xff]
                  %257 = vst [vmem:[%s249 + $0x18] sm:$0xff] %v256
                  %v258 = vld [vmem:[%s248 + $0x40] sm:$0xff]
                  %259 = vst [vmem:[%s249 + $0x20] sm:$0xff] %v258
                  %v260 = vld [vmem:[%s248 + $0x50] sm:$0xff]
                  %261 = vst [vmem:[%s249 + $0x28] sm:$0xff] %v260
                  %v262 = vld [vmem:[%s248 + $0x60] sm:$0xff]
                  %263 = vst [vmem:[%s249 + $0x30] sm:$0xff] %v262
                  %v264 = vld [vmem:[%s248 + $0x70] sm:$0xff]
                  %265 = vst [vmem:[%s249 + $0x38] sm:$0xff] %v264
                $region60: #{upsample_forward.1} parent=54 // loop_footer
                  %s247 = sadd.s32 1, %s243
                $region61: #{upsample_forward.1} parent=54 // loop_footer_branch
                  %242 = sbr.rel target = $region57
                $region62: #{upsample_forward.1} parent=54 // loop_exit
                  _
              $region55: #{upsample_forward.1} parent=39 // pred_fallthru
                _
              // Predicated region
              $region63: #{upsample_forward.1} parent=39 // pred_check
                _
              $region64: #{upsample_forward.1} parent=39 // pred_check_branch
                %267 = sbr.rel target = $region66
              $region65: #{upsample_forward.1} parent=39 // pred_region
                _
              $region66: #{upsample_forward.1} parent=39 // pred_fallthru
                _
            $region40: #{upsample_forward.1} parent=35 // pred_fallthru
              _
            // Predicated region
            $region41: #{upsample_forward.1} parent=35 // pred_check
              _
            $region42: #{upsample_forward.1} parent=35 // pred_check_branch
              %214 = sbr.rel target = $region44
            $region43: #{upsample_forward.1} parent=35 // pred_region
              loop: start=0, step=1, limit=1
              $region45: #{upsample_forward.1} parent=43 // loop_pre_header
                _
              $region46: #{upsample_forward.1} parent=43 // loop_header
                %s217 = sphi 0, %s221
                %p218 = scmp.ge.s32.totalorder %s217, 1
                %s222 = sphi %s208, %s208
                %s223 = sphi %s204, %s204
              $region47: #{upsample_forward.1} parent=43 // loop_header_branch
                %220 = sbr.rel (%p218) target = $region51
              $region48: #{upsample_forward.1} parent=43 // loop_body
                %v224 = vld [vmem:[%s222] sm:$0xff]
                %225 = vst [vmem:[%s223] sm:$0xff] %v224
                %v226 = vld [vmem:[%s222 + $0x10] sm:$0xff]
                %227 = vst [vmem:[%s223 + $0x8] sm:$0xff] %v226
                %v228 = vld [vmem:[%s222 + $0x20] sm:$0xff]
                %229 = vst [vmem:[%s223 + $0x10] sm:$0xff] %v228
                %v230 = vld [vmem:[%s222 + $0x30] sm:$0xff]
                %231 = vst [vmem:[%s223 + $0x18] sm:$0xff] %v230
                %v232 = vld [vmem:[%s222 + $0x40] sm:$0xff]
                %233 = vst [vmem:[%s223 + $0x20] sm:$0xff] %v232
                %v234 = vld [vmem:[%s222 + $0x50] sm:$0xff]
                %235 = vst [vmem:[%s223 + $0x28] sm:$0xff] %v234
                %v236 = vld [vmem:[%s222 + $0x60] sm:$0xff]
                %237 = vst [vmem:[%s223 + $0x30] sm:$0xff] %v236
                %v238 = vld [vmem:[%s222 + $0x70] sm:$0xff]
                %239 = vst [vmem:[%s223 + $0x38] sm:$0xff] %v238
              $region49: #{upsample_forward.1} parent=43 // loop_footer
                %s221 = sadd.s32 1, %s217
              $region50: #{upsample_forward.1} parent=43 // loop_footer_branch
                %216 = sbr.rel target = $region46
              $region51: #{upsample_forward.1} parent=43 // loop_exit
                _
            $region44: #{upsample_forward.1} parent=35 // pred_fallthru
              _
          $region36: #{upsample_forward.1} parent=31 // pred_fallthru
            _
          %268 = vnop
        $region32: #{upsample_forward.1} parent=27 // pred_fallthru
          _
        // Predicated region
        $region67: #{upsample_forward.1} parent=27 // pred_check
          %p269 = pneg %p136
        $region68: #{upsample_forward.1} parent=27 // pred_check_branch
          %271 = sbr.rel (%p269) target = $region70
        $region69: #{upsample_forward.1} parent=27 // pred_region
          %s272 = sand.u32 %s126, 1
          %s273 = sand.u32 %s126, 1
          %s274 = smul.addr %s273, 128
          %s275 = scalar_lea.vmem [#allocation3], %s274
          %s276 = smul.u32 4, %s19
          %s277 = smul.addr %s18, 32
          %s278 = sadd.s32 %s276, %s277
          %s279 = smul.addr %s278, 8
          %s280 = scalar_lea.vmem %s4, %s279
          // Predicated region
          $region71: #{upsample_forward.1} parent=69 // pred_check
            _
          $region72: #{upsample_forward.1} parent=69 // pred_check_branch
            %282 = sbr.rel (0) target = $region74
          $region73: #{upsample_forward.1} parent=69 // pred_region
            // Predicated region
            $region75: #{upsample_forward.1} parent=73 // pred_check
              _
            $region76: #{upsample_forward.1} parent=73 // pred_check_branch
              %284 = sbr.rel (0) target = $region78
            $region77: #{upsample_forward.1} parent=73 // pred_region
              loop: start=0, step=1, limit=1
              $region79: #{upsample_forward.1} parent=77 // loop_pre_header
                _
              $region80: #{upsample_forward.1} parent=77 // loop_header
                %s286 = sphi 0, %s290
                %p287 = scmp.ge.s32.totalorder %s286, 1
                %s291 = sphi %s280, %s280
                %s292 = sphi %s275, %s275
              $region81: #{upsample_forward.1} parent=77 // loop_header_branch
                %289 = sbr.rel (%p287) target = $region85
              $region82: #{upsample_forward.1} parent=77 // loop_body
                %v293 = vld [vmem:[%s291] sm:$0xff]
                %294 = vst [vmem:[%s292] sm:$0xff] %v293
                %v295 = vld [vmem:[%s291 + $0x8] sm:$0xff]
                %296 = vst [vmem:[%s292 + $0x8] sm:$0xff] %v295
                %v297 = vld [vmem:[%s291 + $0x10] sm:$0xff]
                %298 = vst [vmem:[%s292 + $0x10] sm:$0xff] %v297
                %v299 = vld [vmem:[%s291 + $0x18] sm:$0xff]
                %300 = vst [vmem:[%s292 + $0x18] sm:$0xff] %v299
                %v301 = vld [vmem:[%s291 + $0x40] sm:$0xff]
                %302 = vst [vmem:[%s292 + $0x20] sm:$0xff] %v301
                %v303 = vld [vmem:[%s291 + $0x48] sm:$0xff]
                %304 = vst [vmem:[%s292 + $0x28] sm:$0xff] %v303
                %v305 = vld [vmem:[%s291 + $0x50] sm:$0xff]
                %306 = vst [vmem:[%s292 + $0x30] sm:$0xff] %v305
                %v307 = vld [vmem:[%s291 + $0x58] sm:$0xff]
                %308 = vst [vmem:[%s292 + $0x38] sm:$0xff] %v307
                %v309 = vld [vmem:[%s291 + $0x80] sm:$0xff]
                %310 = vst [vmem:[%s292 + $0x40] sm:$0xff] %v309
                %v311 = vld [vmem:[%s291 + $0x88] sm:$0xff]
                %312 = vst [vmem:[%s292 + $0x48] sm:$0xff] %v311
                %v313 = vld [vmem:[%s291 + $0x90] sm:$0xff]
                %314 = vst [vmem:[%s292 + $0x50] sm:$0xff] %v313
                %v315 = vld [vmem:[%s291 + $0x98] sm:$0xff]
                %316 = vst [vmem:[%s292 + $0x58] sm:$0xff] %v315
                %v317 = vld [vmem:[%s291 + $0xc0] sm:$0xff]
                %318 = vst [vmem:[%s292 + $0x60] sm:$0xff] %v317
                %v319 = vld [vmem:[%s291 + $0xc8] sm:$0xff]
                %320 = vst [vmem:[%s292 + $0x68] sm:$0xff] %v319
                %v321 = vld [vmem:[%s291 + $0xd0] sm:$0xff]
                %322 = vst [vmem:[%s292 + $0x70] sm:$0xff] %v321
                %v323 = vld [vmem:[%s291 + $0xd8] sm:$0xff]
                %324 = vst [vmem:[%s292 + $0x78] sm:$0xff] %v323
              $region83: #{upsample_forward.1} parent=77 // loop_footer
                %s290 = sadd.s32 1, %s286
              $region84: #{upsample_forward.1} parent=77 // loop_footer_branch
                %285 = sbr.rel target = $region80
              $region85: #{upsample_forward.1} parent=77 // loop_exit
                _
            $region78: #{upsample_forward.1} parent=73 // pred_fallthru
              _
            // Predicated region
            $region86: #{upsample_forward.1} parent=73 // pred_check
              _
            $region87: #{upsample_forward.1} parent=73 // pred_check_branch
              %326 = sbr.rel target = $region89
            $region88: #{upsample_forward.1} parent=73 // pred_region
              _
            $region89: #{upsample_forward.1} parent=73 // pred_fallthru
              _
          $region74: #{upsample_forward.1} parent=69 // pred_fallthru
            _
          %327 = vnop
        $region70: #{upsample_forward.1} parent=27 // pred_fallthru
          _
      $region28: #{upsample_forward.1} parent=5 // pred_fallthru
        _
      %p328 = scmp.le.s32.totalorder 1, %s11
      %p329 = scmp.lt.s32.totalorder %s11, 5
      %p330 = pnand %p328, %p329
      %p331 = pneg %p330
      // Predicated region
      $region90: #{upsample_forward.1} parent=5 // pred_check
        _
      $region91: #{upsample_forward.1} parent=5 // pred_check_branch
        %333 = sbr.rel (%p330) target = $region93
      $region92: #{upsample_forward.1} parent=5 // pred_region
        %s334 = ssub.s32 %s11, 1
        %s335 = sand.u32 %s38, 1
        %s336 = sand.u32 %s38, 1
        %s337 = smul.addr %s336, 64
        %s338 = scalar_lea.vmem [#allocation2], %s337
        // Predicated region
        $region94: #{upsample_forward.1} parent=92 // pred_check
          %p339 = pneg %p51
        $region95: #{upsample_forward.1} parent=92 // pred_check_branch
          %341 = sbr.rel (%p339) target = $region97
        $region96: #{upsample_forward.1} parent=92 // pred_region
          _
        $region97: #{upsample_forward.1} parent=92 // pred_fallthru
          _
        %s342 = sand.u32 %s129, 1
        %s343 = sand.u32 %s129, 1
        %s344 = smul.addr %s343, 128
        %s345 = scalar_lea.vmem [#allocation3], %s344
        // Predicated region
        $region98: #{upsample_forward.1} parent=92 // pred_check
          %p346 = pneg %p142
        $region99: #{upsample_forward.1} parent=92 // pred_check_branch
          %348 = sbr.rel (%p346) target = $region101
        $region100: #{upsample_forward.1} parent=92 // pred_region
          _
        $region101: #{upsample_forward.1} parent=92 // pred_fallthru
          _
        %s349 = sand.u32 %s38, 1
        %s350 = sand.u32 %s38, 1
        %s351 = smul.addr %s350, 64
        %s352 = scalar_lea.vmem [#allocation2], %s351
        %p353 = pneg %p51
        %p354 = pneg %p48
        %p355 = pneg %p72
        %p356 = pneg %p69
        %p357 = pneg %p93
        %p358 = pneg %p90
        %p359 = pneg %p114
        %p360 = pneg %p111
        %s361 = sand.u32 %s129, 1
        %s362 = sand.u32 %s129, 1
        %s363 = smul.addr %s362, 128
        %s364 = scalar_lea.vmem [#allocation3], %s363
        %p365 = pneg %p142
        %p366 = pneg %p139
        %p367 = pneg %p170
        %p368 = pneg %p167
        %s369 = sand.u32 %s157, 1
        %s370 = sand.u32 %s157, 1
        %s371 = smul.addr %s370, 256
        %s372 = scalar_lea.vmem [#allocation4], %s371
        %s373 = smul.u32 4, %s21
        %s374 = smul.u32 4, %s21
        %v375 = vld [vmem:[%s1] sm:$0xff]
        %v376 = vld [vmem:[%s1 + $0x8] sm:$0xff]
        %v377 = vld [vmem:[%s1 + $0x10] sm:$0xff]
        %v378 = vld [vmem:[%s1 + $0x18] sm:$0xff]
        %v379 = vld [vmem:[%s338] sm:$0xff]
        %v380 = vld [vmem:[%s338 + $0x8] sm:$0xff]
        %v381 = vld [vmem:[%s338 + $0x10] sm:$0xff]
        %v382 = vld [vmem:[%s338 + $0x18] sm:$0xff]
        %v383 = vld [vmem:[%s338 + $0x20] sm:$0xff]
        %v384 = vld [vmem:[%s338 + $0x28] sm:$0xff]
        %v385 = vld [vmem:[%s338 + $0x30] sm:$0xff]
        %v386 = vld [vmem:[%s338 + $0x38] sm:$0xff]
        %v387 = vld [vmem:[%s2] sm:$0xff]
        %v388 = vld [vmem:[%s2 + $0x8] sm:$0xff]
        %v389 = vld [vmem:[%s2 + $0x10] sm:$0xff]
        %v390 = vld [vmem:[%s2 + $0x18] sm:$0xff]
        %392 = vset.pattern.permute.xlu0 0
        %393 = vperm.xlu0 %392, %v387
        %v394 = vpop.permute.xlu0 %393
        %397 = vset.pattern.permute.xlu0 0
        %398 = vperm.xlu0 %397, %v388
        %v399 = vpop.permute.xlu0 %398
        %402 = vset.pattern.permute.xlu0 0
        %403 = vperm.xlu0 %402, %v389
        %v404 = vpop.permute.xlu0 %403
        %407 = vset.pattern.permute.xlu0 0
        %408 = vperm.xlu0 %407, %v390
        %v409 = vpop.permute.xlu0 %408
        %vm411 = vcmask 523264
        %v413 = vsel %vm411, %v375, 0
        %v416 = vsel %vm411, %v376, 0
        %v419 = vsel %vm411, %v377, 0
        %v422 = vsel %vm411, %v378, 0
        %424 = vmatprep.subr.mxu0 0.0
        %425 = vmatpush1.msra.mxu0 %v379
        %426 = vmatprep.subr.mxu0 0.0
        %427 = vmatpush1.msra.mxu0 %v380
        %428 = vmatprep.subr.mxu0 0.0
        %429 = vmatpush1.msra.mxu0 %v381
        %430 = vmatprep.subr.mxu0 0.0
        %431 = vmatpush1.msra.mxu0 %v382
        %432 = vmatprep.subr.mxu0 0.0
        %433 = vmatpush1.msra.mxu0 %v383
        %434 = vmatprep.subr.mxu0 0.0
        %435 = vmatpush1.msra.mxu0 %v384
        %436 = vmatprep.subr.mxu0 0.0
        %437 = vmatpush1.msra.mxu0 %v385
        %438 = vmatprep.subr.mxu0 0.0
        %439 = vmatpush1.msra.mxu0 %v386
        %440 = vmatprep.subr.mxu0 0.0
        %441 = vmatpush1.msra.mxu0 0.0
        %442 = vmatprep.subr.mxu0 0.0
        %443 = vmatpush1.msra.mxu0 0.0
        %444 = vmatprep.subr.mxu0 0.0
        %445 = vmatpush1.msra.mxu0 0.0
        %446 = vmatprep.subr.mxu0 0.0
        %447 = vmatpush1.msra.mxu0 0.0
        %448 = vmatprep.subr.mxu0 0.0
        %449 = vmatpush1.msra.mxu0 0.0
        %450 = vmatprep.subr.mxu0 0.0
        %451 = vmatpush1.msra.mxu0 0.0
        %452 = vmatprep.subr.mxu0 0.0
        %453 = vmatpush1.msra.mxu0 0.0
        %454 = vmatprep.subr.mxu0 0.0
        %455 = vmatpush1.msra.mxu0 0.0
        %456 = vmatprep.subr.mxu0 0.0
        %457 = vmatpush1.msra.mxu0 0.0
        %458 = vmatprep.subr.mxu0 0.0
        %459 = vmatpush1.msra.mxu0 0.0
        %460 = vmatprep.subr.mxu0 0.0
        %461 = vmatpush1.msra.mxu0 0.0
        %462 = vmatprep.subr.mxu0 0.0
        %463 = vmatpush1.msra.mxu0 0.0
        %464 = vmatprep.subr.mxu0 0.0
        %465 = vmatpush1.msra.mxu0 0.0
        %466 = vmatprep.subr.mxu0 0.0
        %467 = vmatpush1.msra.mxu0 0.0
        %468 = vmatprep.subr.mxu0 0.0
        %469 = vmatpush1.msra.mxu0 0.0
        %470 = vmatprep.subr.mxu0 0.0
        %471 = vmatpush1.msra.mxu0 0.0
        %472 = vmatprep.subr.mxu0 0.0
        %473 = vmatpush1.msra.mxu0 0.0
        %474 = vmatprep.subr.mxu0 0.0
        %475 = vmatpush1.msra.mxu0 0.0
        %476 = vmatprep.subr.mxu0 0.0
        %477 = vmatpush1.msra.mxu0 0.0
        %478 = vmatprep.subr.mxu0 0.0
        %479 = vmatpush1.msra.mxu0 0.0
        %480 = vmatprep.subr.mxu0 0.0
        %481 = vmatpush1.msra.mxu0 0.0
        %482 = vmatprep.subr.mxu0 0.0
        %483 = vmatpush1.msra.mxu0 0.0
        %484 = vmatprep.subr.mxu0 0.0
        %485 = vmatpush1.msra.mxu0 0.0
        %486 = vmatprep.subr.mxu0 0.0
        %487 = vmatpush1.msra.mxu0 0.0
        %488 = vmatprep.mubr.f32.mxu0 0.0
        %489 = vmatmul.mubr.f32.gmra.mrb[0].mxu0 %v413
        %v490 = vpop.f32.mrb[0].mxu0
        %v491 = vadd.f32 %v394, %v490
        %v492 = vpop.f32.mrb[0].mxu0
        %493 = vmatprep.mubr.f32.mxu0 0.0
        %494 = vmatmul.mubr.f32.gmra.mrb[0].mxu0 %v416
        %v495 = vpop.f32.mrb[0].mxu0
        %v496 = vadd.f32 %v399, %v495
        %v497 = vpop.f32.mrb[0].mxu0
        %498 = vmatprep.mubr.f32.mxu0 0.0
        %499 = vmatmul.mubr.f32.gmra.mrb[0].mxu0 %v419
        %v500 = vpop.f32.mrb[0].mxu0
        %v501 = vadd.f32 %v404, %v500
        %v502 = vpop.f32.mrb[0].mxu0
        %503 = vmatprep.mubr.f32.mxu0 0.0
        %504 = vmatmul.mubr.f32.gmra.mrb[0].mxu0 %v422
        %v505 = vpop.f32.mrb[0].mxu0
        %v506 = vadd.f32 %v409, %v505
        %v507 = vpop.f32.mrb[0].mxu0
        %508 = vdwg.mxu0
        %v509 = vld [vmem:[%s3] sm:$0xff]
        %v510 = vld [vmem:[%s3 + $0x8] sm:$0xff]
        %v511 = vld [vmem:[%s3 + $0x10] sm:$0xff]
        %v512 = vld [vmem:[%s3 + $0x18] sm:$0xff]
        %v513 = vld [vmem:[%s3 + $0x20] sm:$0xff]
        %v514 = vld [vmem:[%s3 + $0x28] sm:$0xff]
        %v515 = vld [vmem:[%s3 + $0x30] sm:$0xff]
        %v516 = vld [vmem:[%s3 + $0x38] sm:$0xff]
        %v517 = vld [vmem:[%s3 + $0x40] sm:$0xff]
        %v518 = vld [vmem:[%s3 + $0x48] sm:$0xff]
        %v519 = vld [vmem:[%s3 + $0x50] sm:$0xff]
        %v520 = vld [vmem:[%s3 + $0x58] sm:$0xff]
        %v521 = vld [vmem:[%s3 + $0x60] sm:$0xff]
        %v522 = vld [vmem:[%s3 + $0x68] sm:$0xff]
        %v523 = vld [vmem:[%s3 + $0x70] sm:$0xff]
        %v524 = vld [vmem:[%s3 + $0x78] sm:$0xff]
        %v525 = vld [vmem:[%s3 + $0x80] sm:$0xff]
        %v526 = vld [vmem:[%s3 + $0x88] sm:$0xff]
        %v527 = vld [vmem:[%s3 + $0x90] sm:$0xff]
        %v528 = vld [vmem:[%s3 + $0x98] sm:$0xff]
        %v529 = vld [vmem:[%s3 + $0xa0] sm:$0xff]
        %v530 = vld [vmem:[%s3 + $0xa8] sm:$0xff]
        %v531 = vld [vmem:[%s3 + $0xb0] sm:$0xff]
        %v532 = vld [vmem:[%s3 + $0xb8] sm:$0xff]
        %v533 = vld [vmem:[%s3 + $0xc0] sm:$0xff]
        %v534 = vld [vmem:[%s3 + $0xc8] sm:$0xff]
        %v535 = vld [vmem:[%s3 + $0xd0] sm:$0xff]
        %v536 = vld [vmem:[%s3 + $0xd8] sm:$0xff]
        %v537 = vld [vmem:[%s3 + $0xe0] sm:$0xff]
        %v538 = vld [vmem:[%s3 + $0xe8] sm:$0xff]
        %v539 = vld [vmem:[%s3 + $0xf0] sm:$0xff]
        %v540 = vld [vmem:[%s3 + $0xf8] sm:$0xff]
        %v541 = vld [vmem:[%s3 + $0x100] sm:$0xff]
        %v542 = vld [vmem:[%s3 + $0x108] sm:$0xff]
        %v543 = vld [vmem:[%s3 + $0x110] sm:$0xff]
        %v544 = vld [vmem:[%s3 + $0x118] sm:$0xff]
        %v545 = vld [vmem:[%s3 + $0x120] sm:$0xff]
        %v546 = vld [vmem:[%s3 + $0x128] sm:$0xff]
        %v547 = vld [vmem:[%s3 + $0x130] sm:$0xff]
        %v548 = vld [vmem:[%s3 + $0x138] sm:$0xff]
        %v549 = vld [vmem:[%s3 + $0x140] sm:$0xff]
        %v550 = vld [vmem:[%s3 + $0x148] sm:$0xff]
        %v551 = vld [vmem:[%s3 + $0x150] sm:$0xff]
        %v552 = vld [vmem:[%s3 + $0x158] sm:$0xff]
        %v553 = vld [vmem:[%s3 + $0x160] sm:$0xff]
        %v554 = vld [vmem:[%s3 + $0x168] sm:$0xff]
        %v555 = vld [vmem:[%s3 + $0x170] sm:$0xff]
        %v556 = vld [vmem:[%s3 + $0x178] sm:$0xff]
        %v557 = vld [vmem:[%s3 + $0x180] sm:$0xff]
        %v558 = vld [vmem:[%s3 + $0x188] sm:$0xff]
        %v559 = vld [vmem:[%s3 + $0x190] sm:$0xff]
        %v560 = vld [vmem:[%s3 + $0x198] sm:$0xff]
        %v561 = vld [vmem:[%s3 + $0x1a0] sm:$0xff]
        %v562 = vld [vmem:[%s3 + $0x1a8] sm:$0xff]
        %v563 = vld [vmem:[%s3 + $0x1b0] sm:$0xff]
        %v564 = vld [vmem:[%s3 + $0x1b8] sm:$0xff]
        %v565 = vld [vmem:[%s3 + $0x1c0] sm:$0xff]
        %v566 = vld [vmem:[%s3 + $0x1c8] sm:$0xff]
        %v567 = vld [vmem:[%s3 + $0x1d0] sm:$0xff]
        %v568 = vld [vmem:[%s3 + $0x1d8] sm:$0xff]
        %v569 = vld [vmem:[%s3 + $0x1e0] sm:$0xff]
        %v570 = vld [vmem:[%s3 + $0x1e8] sm:$0xff]
        %v571 = vld [vmem:[%s3 + $0x1f0] sm:$0xff]
        %v572 = vld [vmem:[%s3 + $0x1f8] sm:$0xff]
        %573 = vmatprep.subr.mxu0 %v510
        %574 = vmatpush1.msra.mxu0 %v509
        %575 = vmatprep.subr.mxu0 %v514
        %576 = vmatpush1.msra.mxu0 %v513
        %577 = vmatprep.subr.mxu0 %v518
        %578 = vmatpush1.msra.mxu0 %v517
        %579 = vmatprep.subr.mxu0 %v522
        %580 = vmatpush1.msra.mxu0 %v521
        %581 = vmatprep.subr.mxu0 %v526
        %582 = vmatpush1.msra.mxu0 %v525
        %583 = vmatprep.subr.mxu0 %v530
        %584 = vmatpush1.msra.mxu0 %v529
        %585 = vmatprep.subr.mxu0 %v534
        %586 = vmatpush1.msra.mxu0 %v533
        %587 = vmatprep.subr.mxu0 %v538
        %588 = vmatpush1.msra.mxu0 %v537
        %589 = vmatprep.subr.mxu0 %v542
        %590 = vmatpush1.msra.mxu0 %v541
        %591 = vmatprep.subr.mxu0 %v546
        %592 = vmatpush1.msra.mxu0 %v545
        %593 = vmatprep.subr.mxu0 %v550
        %594 = vmatpush1.msra.mxu0 %v549
        %595 = vmatprep.subr.mxu0 %v554
        %596 = vmatpush1.msra.mxu0 %v553
        %597 = vmatprep.subr.mxu0 %v558
        %598 = vmatpush1.msra.mxu0 %v557
        %599 = vmatprep.subr.mxu0 %v562
        %600 = vmatpush1.msra.mxu0 %v561
        %601 = vmatprep.subr.mxu0 %v566
        %602 = vmatpush1.msra.mxu0 %v565
        %603 = vmatprep.subr.mxu0 %v570
        %604 = vmatpush1.msra.mxu0 %v569
        %605 = vmatprep.subr.mxu0 0.0
        %606 = vmatpush1.msra.mxu0 0.0
        %607 = vmatprep.subr.mxu0 0.0
        %608 = vmatpush1.msra.mxu0 0.0
        %609 = vmatprep.subr.mxu0 0.0
        %610 = vmatpush1.msra.mxu0 0.0
        %611 = vmatprep.subr.mxu0 0.0
        %612 = vmatpush1.msra.mxu0 0.0
        %613 = vmatprep.subr.mxu0 0.0
        %614 = vmatpush1.msra.mxu0 0.0
        %615 = vmatprep.subr.mxu0 0.0
        %616 = vmatpush1.msra.mxu0 0.0
        %617 = vmatprep.subr.mxu0 0.0
        %618 = vmatpush1.msra.mxu0 0.0
        %619 = vmatprep.subr.mxu0 0.0
        %620 = vmatpush1.msra.mxu0 0.0
        %621 = vmatprep.subr.mxu0 0.0
        %622 = vmatpush1.msra.mxu0 0.0
        %623 = vmatprep.subr.mxu0 0.0
        %624 = vmatpush1.msra.mxu0 0.0
        %625 = vmatprep.subr.mxu0 0.0
        %626 = vmatpush1.msra.mxu0 0.0
        %627 = vmatprep.subr.mxu0 0.0
        %628 = vmatpush1.msra.mxu0 0.0
        %629 = vmatprep.subr.mxu0 0.0
        %630 = vmatpush1.msra.mxu0 0.0
        %631 = vmatprep.subr.mxu0 0.0
        %632 = vmatpush1.msra.mxu0 0.0
        %633 = vmatprep.subr.mxu0 0.0
        %634 = vmatpush1.msra.mxu0 0.0
        %635 = vmatprep.subr.mxu0 0.0
        %636 = vmatpush1.msra.mxu0 0.0
        %637 = vmatprep.mubr.f32.mxu0 0.0
        %638 = vmatmul.mubr.f32.gmra.mrb[0].mxu0 %v491
        %v639 = vpop.f32.mrb[0].mxu0
        %v640 = vadd.f32 0.0, %v639
        %v641 = vpop.f32.mrb[0].mxu0
        %v642 = vadd.f32 0.0, %v641
        %643 = vmatprep.mubr.f32.mxu0 0.0
        %644 = vmatmul.mubr.f32.gmra.mrb[0].mxu0 %v496
        %v645 = vpop.f32.mrb[0].mxu0
        %v646 = vadd.f32 0.0, %v645
        %v647 = vpop.f32.mrb[0].mxu0
        %v648 = vadd.f32 0.0, %v647
        %649 = vmatprep.mubr.f32.mxu0 0.0
        %650 = vmatmul.mubr.f32.gmra.mrb[0].mxu0 %v501
        %v651 = vpop.f32.mrb[0].mxu0
        %v652 = vadd.f32 0.0, %v651
        %v653 = vpop.f32.mrb[0].mxu0
        %v654 = vadd.f32 0.0, %v653
        %655 = vmatprep.mubr.f32.mxu0 0.0
        %656 = vmatmul.mubr.f32.gmra.mrb[0].mxu0 %v506
        %v657 = vpop.f32.mrb[0].mxu0
        %v658 = vadd.f32 0.0, %v657
        %v659 = vpop.f32.mrb[0].mxu0
        %v660 = vadd.f32 0.0, %v659
        %661 = vdwg.mxu0
        %662 = vmatprep.subr.mxu0 %v512
        %663 = vmatpush1.msra.mxu0 %v511
        %664 = vmatprep.subr.mxu0 %v516
        %665 = vmatpush1.msra.mxu0 %v515
        %666 = vmatprep.subr.mxu0 %v520
        %667 = vmatpush1.msra.mxu0 %v519
        %668 = vmatprep.subr.mxu0 %v524
        %669 = vmatpush1.msra.mxu0 %v523
        %670 = vmatprep.subr.mxu0 %v528
        %671 = vmatpush1.msra.mxu0 %v527
        %672 = vmatprep.subr.mxu0 %v532
        %673 = vmatpush1.msra.mxu0 %v531
        %674 = vmatprep.subr.mxu0 %v536
        %675 = vmatpush1.msra.mxu0 %v535
        %676 = vmatprep.subr.mxu0 %v540
        %677 = vmatpush1.msra.mxu0 %v539
        %678 = vmatprep.subr.mxu0 %v544
        %679 = vmatpush1.msra.mxu0 %v543
        %680 = vmatprep.subr.mxu0 %v548
        %681 = vmatpush1.msra.mxu0 %v547
        %682 = vmatprep.subr.mxu0 %v552
        %683 = vmatpush1.msra.mxu0 %v551
        %684 = vmatprep.subr.mxu0 %v556
        %685 = vmatpush1.msra.mxu0 %v555
        %686 = vmatprep.subr.mxu0 %v560
        %687 = vmatpush1.msra.mxu0 %v559
        %688 = vmatprep.subr.mxu0 %v564
        %689 = vmatpush1.msra.mxu0 %v563
        %690 = vmatprep.subr.mxu0 %v568
        %691 = vmatpush1.msra.mxu0 %v567
        %692 = vmatprep.subr.mxu0 %v572
        %693 = vmatpush1.msra.mxu0 %v571
        %694 = vmatprep.subr.mxu0 0.0
        %695 = vmatpush1.msra.mxu0 0.0
        %696 = vmatprep.subr.mxu0 0.0
        %697 = vmatpush1.msra.mxu0 0.0
        %698 = vmatprep.subr.mxu0 0.0
        %699 = vmatpush1.msra.mxu0 0.0
        %700 = vmatprep.subr.mxu0 0.0
        %701 = vmatpush1.msra.mxu0 0.0
        %702 = vmatprep.subr.mxu0 0.0
        %703 = vmatpush1.msra.mxu0 0.0
        %704 = vmatprep.subr.mxu0 0.0
        %705 = vmatpush1.msra.mxu0 0.0
        %706 = vmatprep.subr.mxu0 0.0
        %707 = vmatpush1.msra.mxu0 0.0
        %708 = vmatprep.subr.mxu0 0.0
        %709 = vmatpush1.msra.mxu0 0.0
        %710 = vmatprep.subr.mxu0 0.0
        %711 = vmatpush1.msra.mxu0 0.0
        %712 = vmatprep.subr.mxu0 0.0
        %713 = vmatpush1.msra.mxu0 0.0
        %714 = vmatprep.subr.mxu0 0.0
        %715 = vmatpush1.msra.mxu0 0.0
        %716 = vmatprep.subr.mxu0 0.0
        %717 = vmatpush1.msra.mxu0 0.0
        %718 = vmatprep.subr.mxu0 0.0
        %719 = vmatpush1.msra.mxu0 0.0
        %720 = vmatprep.subr.mxu0 0.0
        %721 = vmatpush1.msra.mxu0 0.0
        %722 = vmatprep.subr.mxu0 0.0
        %723 = vmatpush1.msra.mxu0 0.0
        %724 = vmatprep.subr.mxu0 0.0
        %725 = vmatpush1.msra.mxu0 0.0
        %726 = vmatprep.mubr.f32.mxu0 0.0
        %727 = vmatmul.mubr.f32.gmra.mrb[0].mxu0 %v491
        %v728 = vpop.f32.mrb[0].mxu0
        %v729 = vadd.f32 0.0, %v728
        %v730 = vpop.f32.mrb[0].mxu0
        %v731 = vadd.f32 0.0, %v730
        %732 = vmatprep.mubr.f32.mxu0 0.0
        %733 = vmatmul.mubr.f32.gmra.mrb[0].mxu0 %v496
        %v734 = vpop.f32.mrb[0].mxu0
        %v735 = vadd.f32 0.0, %v734
        %v736 = vpop.f32.mrb[0].mxu0
        %v737 = vadd.f32 0.0, %v736
        %738 = vmatprep.mubr.f32.mxu0 0.0
        %739 = vmatmul.mubr.f32.gmra.mrb[0].mxu0 %v501
        %v740 = vpop.f32.mrb[0].mxu0
        %v741 = vadd.f32 0.0, %v740
        %v742 = vpop.f32.mrb[0].mxu0
        %v743 = vadd.f32 0.0, %v742
        %744 = vmatprep.mubr.f32.mxu0 0.0
        %745 = vmatmul.mubr.f32.gmra.mrb[0].mxu0 %v506
        %v746 = vpop.f32.mrb[0].mxu0
        %v747 = vadd.f32 0.0, %v746
        %v748 = vpop.f32.mrb[0].mxu0
        %v749 = vadd.f32 0.0, %v748
        %750 = vdwg.mxu0
        %751 = vst [vmem:[%s372] sm:$0xff] %v640
        %752 = vst [vmem:[%s372 + $0x8] sm:$0xff] %v642
        %753 = vst [vmem:[%s372 + $0x10] sm:$0xff] %v729
        %754 = vst [vmem:[%s372 + $0x18] sm:$0xff] %v731
        %755 = vst [vmem:[%s372 + $0x20] sm:$0xff] %v646
        %756 = vst [vmem:[%s372 + $0x28] sm:$0xff] %v648
        %757 = vst [vmem:[%s372 + $0x30] sm:$0xff] %v735
        %758 = vst [vmem:[%s372 + $0x38] sm:$0xff] %v737
        %759 = vst [vmem:[%s372 + $0x40] sm:$0xff] %v652
        %760 = vst [vmem:[%s372 + $0x48] sm:$0xff] %v654
        %761 = vst [vmem:[%s372 + $0x50] sm:$0xff] %v741
        %762 = vst [vmem:[%s372 + $0x58] sm:$0xff] %v743
        %763 = vst [vmem:[%s372 + $0x60] sm:$0xff] %v658
        %764 = vst [vmem:[%s372 + $0x68] sm:$0xff] %v660
        %765 = vst [vmem:[%s372 + $0x70] sm:$0xff] %v747
        %766 = vst [vmem:[%s372 + $0x78] sm:$0xff] %v749
        %v767 = vld [vmem:[%s345] sm:$0xff]
        %v768 = vld [vmem:[%s345 + $0x8] sm:$0xff]
        %v769 = vld [vmem:[%s345 + $0x10] sm:$0xff]
        %v770 = vld [vmem:[%s345 + $0x18] sm:$0xff]
        %v771 = vld [vmem:[%s345 + $0x20] sm:$0xff]
        %v772 = vld [vmem:[%s345 + $0x28] sm:$0xff]
        %v773 = vld [vmem:[%s345 + $0x30] sm:$0xff]
        %v774 = vld [vmem:[%s345 + $0x38] sm:$0xff]
        %v775 = vld [vmem:[%s345 + $0x40] sm:$0xff]
        %v776 = vld [vmem:[%s345 + $0x48] sm:$0xff]
        %v777 = vld [vmem:[%s345 + $0x50] sm:$0xff]
        %v778 = vld [vmem:[%s345 + $0x58] sm:$0xff]
        %v779 = vld [vmem:[%s345 + $0x60] sm:$0xff]
        %v780 = vld [vmem:[%s345 + $0x68] sm:$0xff]
        %v781 = vld [vmem:[%s345 + $0x70] sm:$0xff]
        %v782 = vld [vmem:[%s345 + $0x78] sm:$0xff]
        %783 = vst [vmem:[%s372 + $0x80] sm:$0xff] %v767
        %784 = vst [vmem:[%s372 + $0x88] sm:$0xff] %v768
        %785 = vst [vmem:[%s372 + $0x90] sm:$0xff] %v769
        %786 = vst [vmem:[%s372 + $0x98] sm:$0xff] %v770
        %787 = vst [vmem:[%s372 + $0xa0] sm:$0xff] %v771
        %788 = vst [vmem:[%s372 + $0xa8] sm:$0xff] %v772
        %789 = vst [vmem:[%s372 + $0xb0] sm:$0xff] %v773
        %790 = vst [vmem:[%s372 + $0xb8] sm:$0xff] %v774
        %791 = vst [vmem:[%s372 + $0xc0] sm:$0xff] %v775
        %792 = vst [vmem:[%s372 + $0xc8] sm:$0xff] %v776
        %793 = vst [vmem:[%s372 + $0xd0] sm:$0xff] %v777
        %794 = vst [vmem:[%s372 + $0xd8] sm:$0xff] %v778
        %795 = vst [vmem:[%s372 + $0xe0] sm:$0xff] %v779
        %796 = vst [vmem:[%s372 + $0xe8] sm:$0xff] %v780
        %797 = vst [vmem:[%s372 + $0xf0] sm:$0xff] %v781
        %798 = vst [vmem:[%s372 + $0xf8] sm:$0xff] %v782
        %s799 = sand.u32 %s157, 1
        %s800 = sand.u32 %s157, 1
        %s801 = smul.addr %s800, 256
        %s802 = scalar_lea.vmem [#allocation4], %s801
        // Predicated region
        $region102: #{upsample_forward.1} parent=92 // pred_check
          %p803 = pneg %p167
        $region103: #{upsample_forward.1} parent=92 // pred_check_branch
          %805 = sbr.rel (%p803) target = $region105
        $region104: #{upsample_forward.1} parent=92 // pred_region
          %s806 = smul.u32 4, %s21
          %s807 = smul.addr %s20, 64
          %s808 = sadd.s32 %s806, %s807
          %s809 = smul.addr %s808, 8
          %s810 = scalar_lea.vmem %s5, %s809
          // Predicated region
          $region106: #{upsample_forward.1} parent=104 // pred_check
            _
          $region107: #{upsample_forward.1} parent=104 // pred_check_branch
            %812 = sbr.rel (0) target = $region109
          $region108: #{upsample_forward.1} parent=104 // pred_region
            // Predicated region
            $region110: #{upsample_forward.1} parent=108 // pred_check
              _
            $region111: #{upsample_forward.1} parent=108 // pred_check_branch
              %814 = sbr.rel (0) target = $region113
            $region112: #{upsample_forward.1} parent=108 // pred_region
              loop: start=0, step=1, limit=1
              $region114: #{upsample_forward.1} parent=112 // loop_pre_header
                _
              $region115: #{upsample_forward.1} parent=112 // loop_header
                %s816 = sphi 0, %s820
                %p817 = scmp.ge.s32.totalorder %s816, 1
                %s821 = sphi %s802, %s802
                %s822 = sphi %s810, %s810
              $region116: #{upsample_forward.1} parent=112 // loop_header_branch
                %819 = sbr.rel (%p817) target = $region120
              $region117: #{upsample_forward.1} parent=112 // loop_body
                %v823 = vld [vmem:[%s821] sm:$0xff]
                %824 = vst [vmem:[%s822] sm:$0xff] %v823
                %v825 = vld [vmem:[%s821 + $0x8] sm:$0xff]
                %826 = vst [vmem:[%s822 + $0x8] sm:$0xff] %v825
                %v827 = vld [vmem:[%s821 + $0x10] sm:$0xff]
                %828 = vst [vmem:[%s822 + $0x10] sm:$0xff] %v827
                %v829 = vld [vmem:[%s821 + $0x18] sm:$0xff]
                %830 = vst [vmem:[%s822 + $0x18] sm:$0xff] %v829
                %v831 = vld [vmem:[%s821 + $0x20] sm:$0xff]
                %832 = vst [vmem:[%s822 + $0x40] sm:$0xff] %v831
                %v833 = vld [vmem:[%s821 + $0x28] sm:$0xff]
                %834 = vst [vmem:[%s822 + $0x48] sm:$0xff] %v833
                %v835 = vld [vmem:[%s821 + $0x30] sm:$0xff]
                %836 = vst [vmem:[%s822 + $0x50] sm:$0xff] %v835
                %v837 = vld [vmem:[%s821 + $0x38] sm:$0xff]
                %838 = vst [vmem:[%s822 + $0x58] sm:$0xff] %v837
                %v839 = vld [vmem:[%s821 + $0x40] sm:$0xff]
                %840 = vst [vmem:[%s822 + $0x80] sm:$0xff] %v839
                %v841 = vld [vmem:[%s821 + $0x48] sm:$0xff]
                %842 = vst [vmem:[%s822 + $0x88] sm:$0xff] %v841
                %v843 = vld [vmem:[%s821 + $0x50] sm:$0xff]
                %844 = vst [vmem:[%s822 + $0x90] sm:$0xff] %v843
                %v845 = vld [vmem:[%s821 + $0x58] sm:$0xff]
                %846 = vst [vmem:[%s822 + $0x98] sm:$0xff] %v845
                %v847 = vld [vmem:[%s821 + $0x60] sm:$0xff]
                %848 = vst [vmem:[%s822 + $0xc0] sm:$0xff] %v847
                %v849 = vld [vmem:[%s821 + $0x68] sm:$0xff]
                %850 = vst [vmem:[%s822 + $0xc8] sm:$0xff] %v849
                %v851 = vld [vmem:[%s821 + $0x70] sm:$0xff]
                %852 = vst [vmem:[%s822 + $0xd0] sm:$0xff] %v851
                %v853 = vld [vmem:[%s821 + $0x78] sm:$0xff]
                %854 = vst [vmem:[%s822 + $0xd8] sm:$0xff] %v853
                %v855 = vld [vmem:[%s821 + $0x80] sm:$0xff]
                %856 = vst [vmem:[%s822 + $0x100] sm:$0xff] %v855
                %v857 = vld [vmem:[%s821 + $0x88] sm:$0xff]
                %858 = vst [vmem:[%s822 + $0x108] sm:$0xff] %v857
                %v859 = vld [vmem:[%s821 + $0x90] sm:$0xff]
                %860 = vst [vmem:[%s822 + $0x110] sm:$0xff] %v859
                %v861 = vld [vmem:[%s821 + $0x98] sm:$0xff]
                %862 = vst [vmem:[%s822 + $0x118] sm:$0xff] %v861
                %v863 = vld [vmem:[%s821 + $0xa0] sm:$0xff]
                %864 = vst [vmem:[%s822 + $0x140] sm:$0xff] %v863
                %v865 = vld [vmem:[%s821 + $0xa8] sm:$0xff]
                %866 = vst [vmem:[%s822 + $0x148] sm:$0xff] %v865
                %v867 = vld [vmem:[%s821 + $0xb0] sm:$0xff]
                %868 = vst [vmem:[%s822 + $0x150] sm:$0xff] %v867
                %v869 = vld [vmem:[%s821 + $0xb8] sm:$0xff]
                %870 = vst [vmem:[%s822 + $0x158] sm:$0xff] %v869
                %v871 = vld [vmem:[%s821 + $0xc0] sm:$0xff]
                %872 = vst [vmem:[%s822 + $0x180] sm:$0xff] %v871
                %v873 = vld [vmem:[%s821 + $0xc8] sm:$0xff]
                %874 = vst [vmem:[%s822 + $0x188] sm:$0xff] %v873
                %v875 = vld [vmem:[%s821 + $0xd0] sm:$0xff]
                %876 = vst [vmem:[%s822 + $0x190] sm:$0xff] %v875
                %v877 = vld [vmem:[%s821 + $0xd8] sm:$0xff]
                %878 = vst [vmem:[%s822 + $0x198] sm:$0xff] %v877
                %v879 = vld [vmem:[%s821 + $0xe0] sm:$0xff]
                %880 = vst [vmem:[%s822 + $0x1c0] sm:$0xff] %v879
                %v881 = vld [vmem:[%s821 + $0xe8] sm:$0xff]
                %882 = vst [vmem:[%s822 + $0x1c8] sm:$0xff] %v881
                %v883 = vld [vmem:[%s821 + $0xf0] sm:$0xff]
                %884 = vst [vmem:[%s822 + $0x1d0] sm:$0xff] %v883
                %v885 = vld [vmem:[%s821 + $0xf8] sm:$0xff]
                %886 = vst [vmem:[%s822 + $0x1d8] sm:$0xff] %v885
              $region118: #{upsample_forward.1} parent=112 // loop_footer
                %s820 = sadd.s32 1, %s816
              $region119: #{upsample_forward.1} parent=112 // loop_footer_branch
                %815 = sbr.rel target = $region115
              $region120: #{upsample_forward.1} parent=112 // loop_exit
                _
            $region113: #{upsample_forward.1} parent=108 // pred_fallthru
              _
            // Predicated region
            $region121: #{upsample_forward.1} parent=108 // pred_check
              _
            $region122: #{upsample_forward.1} parent=108 // pred_check_branch
              %888 = sbr.rel target = $region124
            $region123: #{upsample_forward.1} parent=108 // pred_region
              _
            $region124: #{upsample_forward.1} parent=108 // pred_fallthru
              _
          $region109: #{upsample_forward.1} parent=104 // pred_fallthru
            _
          %889 = vnop
        $region105: #{upsample_forward.1} parent=92 // pred_fallthru
          _
      $region93: #{upsample_forward.1} parent=5 // pred_fallthru
        _
      %p890 = scmp.le.s32.totalorder 2, %s11
      // Predicated region
      $region125: #{upsample_forward.1} parent=5 // pred_check
        %p891 = pneg %p890
      $region126: #{upsample_forward.1} parent=5 // pred_check_branch
        %893 = sbr.rel (%p891) target = $region128
      $region127: #{upsample_forward.1} parent=5 // pred_region
        %s894 = ssub.s32 %s11, 2
        // Predicated region
        $region129: #{upsample_forward.1} parent=127 // pred_check
          %p895 = pneg %p173
        $region130: #{upsample_forward.1} parent=127 // pred_check_branch
          %897 = sbr.rel (%p895) target = $region132
        $region131: #{upsample_forward.1} parent=127 // pred_region
          %s898 = sand.u32 %s158, 1
          %s899 = sand.u32 %s158, 1
          %s900 = smul.addr %s899, 256
          %s901 = scalar_lea.vmem [#allocation4], %s900
        $region132: #{upsample_forward.1} parent=127 // pred_fallthru
          _
      $region128: #{upsample_forward.1} parent=5 // pred_fallthru
        _
    $region6: #{upsample_forward.1} parent=1 // loop_footer
      %s15 = sadd.s32 1, %s11
    $region7: #{upsample_forward.1} parent=1 // loop_footer_branch
      %10 = sbr.rel target = $region3
    $region8: #{upsample_forward.1} parent=1 // loop_exit
      _

</llo_original>
